<compile_context>
chip_gen: v6e
topology: v6e:2x2x1
jax: 0.10.0
libtpu: 0.0.40
codegen_flags: <defaults>
</compile_context>

<pallas_src>
import jax
import jax.numpy as jnp
from jax.experimental import pallas as pl
from jax.experimental.pallas import tpu as pltpu


def _affine_kernel(sb_ref, x_ref, o_ref):
    # sb_ref: (2,) float32 in SMEM -> [scale, bias]. Compute in f32, store in x dtype.
    s = sb_ref[0]
    b = sb_ref[1]
    o_ref[...] = (x_ref[...] * s + b).astype(o_ref.dtype)


def _per_block_bytes():
    """Per-generation DMA block size (bytes) for this memory-bound elementwise op."""
    kind = jax.devices()[0].device_kind.lower()
    if "v5 lite" in kind or "v5e" in kind or "v5lite" in kind:
        return 2 << 20          # v5e: ~0.8 TB/s HBM, 16 MiB scoped-VMEM default
    if "v6" in kind:
        return 4 << 20          # v6e: ~1.4 TB/s, 32 MiB scoped-VMEM default
    if "tpu7" in kind or "7x" in kind or "v7" in kind:
        return 8 << 20          # v7x: ~3.2 TB/s, 64 MiB VMEM/TC -> big tiles amortize per-step overhead
    return 4 << 20              # conservative default (v4 / v5p / unknown)


def learnable_affine_block(x, scale, bias, *, min_pallas_elems=1 << 20, donate_input=False):
    """y = scale * x + bias.

    scale, bias: shape-(1,) float32 params (like nn.Parameter(torch.Tensor([v]))).
    donate_input=True aliases the output onto x (x is overwritten); only use when the
    caller does not reuse x afterwards.
    """
    orig_shape = x.shape
    orig_dtype = x.dtype
    n = x.size

    # Fallback: XLA fuses scale*x+bias into neighbours for essentially zero extra
    # HBM traffic. Used for small/medium tensors (launch overhead dominates a
    # standalone kernel) and for non-128-aligned sizes (avoids pad+slice = 2x traffic).
    if n < max(min_pallas_elems, 1) or n % 128 != 0:
        return (scale[0] * x + bias[0]).astype(orig_dtype)

    # Lane-dense 2-D slab: widest width in {1024,512,256,128} that divides n
    # (unmasked full-width vst; no pad copy).
    width = 128
    for cand in (1024, 512, 256):
        if n % cand == 0:
            width = cand
            break
    rows = n // width
    x2d = x.reshape(rows, width)  # contiguous -> bitcast reshape, no HBM copy

    dsize = jnp.dtype(orig_dtype).itemsize
    block_bytes = _per_block_bytes()
    target_rows = max(8, (block_bytes // (width * dsize)) // 8 * 8)

    # Never a single-step grid on mid/large inputs: aim for >= min_blocks grid steps
    # (double-buffer overlap + both v7x TensorCores), but never exceed the
    # per-generation byte target per block.
    min_blocks = 4
    if rows >= 8 * min_blocks:
        br = min(target_rows, max(8, (rows // min_blocks) // 8 * 8))
    else:
        br = rows  # tiny forced-Pallas case: full-extent single block
    grid = (pl.cdiv(rows, br),)  # ragged last block is masked by Pallas

    # (in + out) x double-buffer = 4 VMEM buffers per block; leave headroom.
    block_vmem = br * width * dsize
    vmem_limit = int(min(max(32 << 20, 4 * block_vmem + (4 << 20)), 48 << 20))

    # Pack the two learnable scalars into one (2,) f32 SMEM operand.
    sb = jnp.concatenate(
        [jnp.ravel(jnp.asarray(scale)), jnp.ravel(jnp.asarray(bias))]
    ).astype(jnp.float32)

    out2d = pl.pallas_call(
        _affine_kernel,
        out_shape=jax.ShapeDtypeStruct((rows, width), orig_dtype),
        grid=grid,
        in_specs=[
            pl.BlockSpec(memory_space=pltpu.SMEM),        # packed [scale, bias]
            pl.BlockSpec((br, width), lambda i: (i, 0)),  # x tile in VMEM
        ],
        out_specs=pl.BlockSpec((br, width), lambda i: (i, 0)),
        input_output_aliases=({1: 0} if donate_input else {}),
        compiler_params=pltpu.CompilerParams(
            dimension_semantics=("parallel",),  # shards grid across v7x's 2 TCs
            vmem_limit_bytes=vmem_limit,
        ),
    )(sb, x2d)

    return out2d.reshape(orig_shape)


if __name__ == "__main__":
    key = jax.random.PRNGKey(0)
    k1, k2, k3, k4 = jax.random.split(key, 4)

    # Parameters: matches __init__(scale_value, bias_value); non-trivial values.
    scale = jnp.array([1.5], dtype=jnp.float32)
    bias = jnp.array([0.25], dtype=jnp.float32)

    # 1) Small NCHW input (2, 4, 16, 16): force the Pallas path (single full block).
    x = jax.random.normal(k1, (2, 4, 16, 16), dtype=jnp.float32)
    y = jax.block_until_ready(learnable_affine_block(x, scale, bias, min_pallas_elems=0))
    assert y.shape == x.shape and y.dtype == x.dtype
    assert jnp.allclose(y, scale[0] * x + bias[0], atol=1e-6, rtol=1e-6)

    # 2) Mid-size input: multi-block parallel grid with a ragged (masked) last block.
    x2 = jax.random.normal(k2, (8, 64, 28, 28), dtype=jnp.float32)
    y2 = jax.block_until_ready(learnable_affine_block(x2, scale, bias, min_pallas_elems=0))
    assert y2.shape == x2.shape and y2.dtype == x2.dtype
    assert jnp.allclose(y2, scale[0] * x2 + bias[0], atol=1e-6, rtol=1e-6)

    # 3) bf16 activations: compute in f32, store bf16.
    x3 = jax.random.normal(k3, (8, 64, 28, 28), dtype=jnp.bfloat16)
    y3 = jax.block_until_ready(learnable_affine_block(x3, scale, bias, min_pallas_elems=0))
    ref3 = (scale[0] * x3.astype(jnp.float32) + bias[0]).astype(jnp.bfloat16)
    assert y3.dtype == jnp.bfloat16 and y3.shape == x3.shape
    assert jnp.allclose(y3.astype(jnp.float32), ref3.astype(jnp.float32), atol=1e-2, rtol=1e-2)

    # 4) Awkward, non-128-aligned size (1326 elems): pad-free fused-XLA fallback.
    x4 = jax.random.normal(k4, (2, 3, 17, 13), dtype=jnp.float32)
    y4 = jax.block_until_ready(learnable_affine_block(x4, scale, bias))
    assert y4.shape == x4.shape and y4.dtype == x4.dtype
    assert jnp.allclose(y4, scale[0] * x4 + bias[0], atol=1e-6, rtol=1e-6)

    print("KERNEL_OK")
</pallas_src>

<mosaic_0001>
module attributes {stable_mosaic.version = 11 : i64} {
  func.func @_affine_kernel(%arg0: i32, %arg1: memref<2xf32, #tpu.memory_space<smem>>, %arg2: memref<2x1024xf32, #tpu.memory_space<vmem>>, %arg3: memref<2x1024xf32, #tpu.memory_space<vmem>>) attributes {dimension_semantics = [#tpu.dimension_semantics<parallel>], iteration_bounds = array<i64: 1>, scalar_prefetch = 0 : i64, scratch_operands = 0 : i64, tpu.core_type = #tpu.core_type<tc>, window_params = [{transform_indices = @transform_0, window_bounds = array<i64: 2>}, {transform_indices = @transform_1, window_bounds = array<i64: 2, 1024>}, {transform_indices = @transform_2, window_bounds = array<i64: 2, 1024>}]} {
    %c0 = arith.constant 0 : index
    %0 = memref.load %arg1[%c0] : memref<2xf32, #tpu.memory_space<smem>>
    %c1 = arith.constant 1 : index
    %1 = memref.load %arg1[%c1] : memref<2xf32, #tpu.memory_space<smem>>
    %c0_0 = arith.constant 0 : index
    %c0_1 = arith.constant 0 : index
    %2 = vector.load %arg2[%c0_0, %c0_1] : memref<2x1024xf32, #tpu.memory_space<vmem>>, vector<2x1024xf32>
    %3 = vector.broadcast %0 : f32 to vector<2x1024xf32>
    %4 = arith.mulf %2, %3 : vector<2x1024xf32>
    %5 = vector.broadcast %1 : f32 to vector<2x1024xf32>
    %6 = arith.addf %4, %5 : vector<2x1024xf32>
    %c0_2 = arith.constant 0 : index
    %c0_3 = arith.constant 0 : index
    %7 = vector.load %arg3[%c0_2, %c0_3] : memref<2x1024xf32, #tpu.memory_space<vmem>>, vector<2x1024xf32>
    tpu.vector_store %arg3[%c0_2, %c0_3], %6 {strides = array<i32>} : memref<2x1024xf32, #tpu.memory_space<vmem>>, vector<2x1024xf32>,
    return
  }
  func.func @transform_0(%arg0: i32) -> i32 {
    %c0_i32 = arith.constant 0 : i32
    %c0_i32_0 = arith.constant 0 : i32
    return %c0_i32 : i32
  }
  func.func @transform_1(%arg0: i32) -> (i32, i32) {
    %c0_i32 = arith.constant 0 : i32
    %c0_i32_0 = arith.constant 0 : i32
    return %arg0, %c0_i32 : i32, i32
  }
  func.func @transform_2(%arg0: i32) -> (i32, i32) {
    %c0_i32 = arith.constant 0 : i32
    %c0_i32_0 = arith.constant 0 : i32
    return %arg0, %c0_i32 : i32, i32
  }
}

</mosaic_0001>

<llo_original>
// kernel: tpu_custom_call.1
$region0: #{tpu_custom_call.1}
  #allocation0 [shape = 'u32[]', space=smem, size = 0x4, offset = 0x4, fixed_abs, tag = 'smem constant byte address 0x4 - core index']
  #allocation1 [shape = 'u32[144,128]{1,0:T(1,128)}', space=vmem, size = 0x12000, scoped, tag = 'internal scratch']
  %s0 = inlined_call_operand.hbm [shape: f32[2], index: 0, kind: input, shape index: {}]
  %s1 = inlined_call_operand.hbm [shape: f32[2,1024], index: 1, kind: input, shape index: {}]
  %s2 = inlined_call_operand.hbm [shape: f32[2,1024], index: 2, kind: output, shape index: {}]
  %s3 = sld [smem:[#allocation0]]
  $region26: #{tpu_custom_call.1} parent=0
    _
  %s5 = ssub.s32 1, %s3
  %s6 = scalar_select 0, %s5, %s3
  $region1: #{tpu_custom_call.1} parent=0
    #allocation2 [shape = 'u8[512]{0}', space=smem, size = 0x200, scoped, tag = 'input window, operand 0, single buffered']
    #allocation3 [shape = 's32[1]{0}', space=sflag, size = 0x4, scoped, tag = 'scoped memory for tpu_custom_call.1']
    #allocation4 [shape = 's32[1]{0}', space=sflag, size = 0x4, scoped, tag = 'scoped memory for tpu_custom_call.1']
    #allocation5 [shape = 's32[1]{0}', space=sflag, size = 0x4, scoped, tag = 'scoped memory for tpu_custom_call.1']
    #allocation6 [shape = 'u8[8192]{0}', space=vmem, size = 0x2000, scoped, tag = 'input window, operand 1, single buffered']
    #allocation7 [shape = 'u8[8192]{0}', space=vmem, size = 0x2000, scoped, tag = 'output window, operand 0, single buffered']
    %7 = vsyncpa [#allocation5], 0
    %8 = vsyncpa [#allocation3], 0
    %9 = vsyncpa [#allocation4], 0
    // Predicated region
    $region2: #{tpu_custom_call.1} parent=1 // pred_check
      _
    $region3: #{tpu_custom_call.1} parent=1 // pred_check_branch
      %11 = sbr.rel (0) target = $region5
    $region4: #{tpu_custom_call.1} parent=1 // pred_region
      %s13 = ssub.s32 16, 16
      %14 = vsyncadd [#allocation5], %s13
      %17 = dma.hbm_to_smem %s0, 16, [#allocation2], [#allocation5]
    $region5: #{tpu_custom_call.1} parent=1 // pred_fallthru
      _
    // Predicated region
    $region6: #{tpu_custom_call.1} parent=1 // pred_check
      _
    $region7: #{tpu_custom_call.1} parent=1 // pred_check_branch
      %19 = sbr.rel (0) target = $region9
    $region8: #{tpu_custom_call.1} parent=1 // pred_region
      %s21 = ssub.s32 256, 256
      %22 = vsyncadd [#allocation3], %s21
      %s24 = sshll.u32 [#allocation6], 4
      %s25 = int_to_ptr.vmem [resolvable:$true] %s24
      %27 = dma.hbm_to_vmem [thread:$0]  %s1, 256, %s25, [#allocation3]
    $region9: #{tpu_custom_call.1} parent=1 // pred_fallthru
      _
    // Predicated region
    $region10: #{tpu_custom_call.1} parent=1 // pred_check
      _
    $region11: #{tpu_custom_call.1} parent=1 // pred_check_branch
      %29 = sbr.rel (0) target = $region13
    $region12: #{tpu_custom_call.1} parent=1 // pred_region
      %30 = dma.done [#allocation5], 16
    $region13: #{tpu_custom_call.1} parent=1 // pred_fallthru
      _
    // Predicated region
    $region14: #{tpu_custom_call.1} parent=1 // pred_check
      _
    $region15: #{tpu_custom_call.1} parent=1 // pred_check_branch
      %32 = sbr.rel (0) target = $region17
    $region16: #{tpu_custom_call.1} parent=1 // pred_region
      %33 = dma.done [#allocation3], 256
    $region17: #{tpu_custom_call.1} parent=1 // pred_fallthru
      _
    %34 = sfence
    %s35 = sld [smem:[#allocation2]]
    %s36 = sld [smem:[#allocation2 + $0x1]]
    %v37 = vld [vmem:[#allocation6] sm:$0xff]
    %v38 = vld [vmem:[#allocation6 + $0x8] sm:$0xff]
    %v39 = vstv %s35
    %v40 = vmul.f32 %v37, %v39
    %v41 = vmul.f32 %v38, %v39
    %v42 = vstv %s36
    %v43 = vadd.f32 %v40, %v42
    %v44 = vadd.f32 %v41, %v42
    %45 = vst [vmem:[#allocation7] sm:$0xff] %v43
    %46 = vst [vmem:[#allocation7 + $0x8] sm:$0xff] %v44
    // Predicated region
    $region18: #{tpu_custom_call.1} parent=1 // pred_check
      _
    $region19: #{tpu_custom_call.1} parent=1 // pred_check_branch
      %48 = sbr.rel (0) target = $region21
    $region20: #{tpu_custom_call.1} parent=1 // pred_region
      %s50 = ssub.s32 256, 256
      %51 = vsyncadd [#allocation4], %s50
      %s53 = sshll.u32 [#allocation7], 4
      %s54 = int_to_ptr.vmem [resolvable:$true] %s53
      %56 = dma.vmem_to_hbm [thread:$0]  %s54, 256, %s2, [#allocation4]
    $region21: #{tpu_custom_call.1} parent=1 // pred_fallthru
      _
    // Predicated region
    $region22: #{tpu_custom_call.1} parent=1 // pred_check
      _
    $region23: #{tpu_custom_call.1} parent=1 // pred_check_branch
      %58 = sbr.rel (0) target = $region25
    $region24: #{tpu_custom_call.1} parent=1 // pred_region
      %59 = dma.done [#allocation4], 256
    $region25: #{tpu_custom_call.1} parent=1 // pred_fallthru
      _
    %60 = vsyncpa [#allocation3], 1
    %61 = vsyncpa [#allocation4], 1
    %62 = vsyncpa [#allocation5], 1

</llo_original>
